<compile_context>
chip_gen: v6e
topology: v6e:2x2x1
jax: 0.10.0
libtpu: 0.0.40
codegen_flags: <defaults>
</compile_context>

<pallas_src>
import math

import jax
import jax.numpy as jnp
from jax.experimental import pallas as pl
from jax.experimental.pallas import tpu as pltpu

KEY_FEATURE_SIZE = 1  # `key.size(3)` in the PyTorch forward


def _round_up(x, m):
    return (x + m - 1) // m * m


def _outer_kernel(params_ref, k_ref, v_ref, out_ref):
    # params_ref (SMEM, (4,)): [wk_eff, bk_eff, wv, bv] where wk_eff/bk_eff
    # already carry q_proj / sqrt(key_size) (folded on the host, scalar math).
    k_col = k_ref[...] * params_ref[0] + params_ref[1]   # (tm, 1)
    v_row = v_ref[...] * params_ref[2] + params_ref[3]   # (1, tn)
    # Lane-dense (tm, tn) outer-product tile; single VPU pass + unmasked vst on
    # interior blocks (edge blocks are clipped by Pallas on writeback).
    out_ref[...] = k_col * v_row


def model_forward(q1, k1, v1, wq, bq, wk, bk, wv, bv, *, tm=128, tn=8192):
    """q1: (1,1,1), k1: (1,Sk,1), v1: (1,Sv,1) float32 -> (Sk, Sv) float32."""
    assert q1.shape == (1, 1, 1), "original forward only shape-consistent for batch=1, Lq=1"
    b, sk, _ = k1.shape
    bv_, sv, _ = v1.shape
    assert b == 1 and bv_ == 1

    # ---- host-side scalar folding (free; kernel becomes one VPU pass) -------
    q_proj = q1[0, 0, 0].astype(jnp.float32) * wq + bq
    scale = q_proj * jnp.float32(1.0 / math.sqrt(KEY_FEATURE_SIZE))
    params = jnp.stack([wk * scale, bk * scale,
                        jnp.asarray(wv, jnp.float32),
                        jnp.asarray(bv, jnp.float32)]).astype(jnp.float32)

    # ---- tiles: short sublane dim (k column), wide lane dim (v row) ---------
    tm = max(8, min(_round_up(tm, 8), _round_up(sk, 8)))
    tn = max(128, min(_round_up(tn, 128), _round_up(sv, 128)))
    # v7x megacore: avoid a 1x1 grid so both TensorCores get a store stream.
    if pl.cdiv(sk, tm) == 1 and pl.cdiv(sv, tn) == 1 and sk > 8:
        tm = _round_up(pl.cdiv(sk, 2), 8)

    # Sv innermost -> the k tile's block index repeats and its DMA is elided.
    grid = (pl.cdiv(sk, tm), pl.cdiv(sv, tn))

    k_col = k1.reshape(sk, 1).astype(jnp.float32)   # contiguous (tm,1) tiles
    v_row = v1.reshape(1, sv).astype(jnp.float32)   # lane-dense (1,tn) tiles

    grid_spec = pltpu.PrefetchScalarGridSpec(
        num_scalar_prefetch=1,                              # `params` -> SMEM
        grid=grid,
        in_specs=[
            pl.BlockSpec((tm, 1), lambda i, j, p: (i, 0)),  # k column tile
            pl.BlockSpec((1, tn), lambda i, j, p: (0, j)),  # v row tile
        ],
        out_specs=pl.BlockSpec((tm, tn), lambda i, j, p: (i, j)),
    )

    # Double-buffered output tile dominates VMEM; cap generation-aware
    # (v7x: 64 MiB/TC physical; v5e/v6e: 128 MiB).
    need = 2 * (tm * tn * 4 + (tm + tn) * 4) + (4 << 20)
    try:
        cap = int(pltpu.get_tpu_info().vmem_capacity_bytes) // 2
    except Exception:
        cap = 32 << 20
    vmem_limit = int(min(need, max(cap, 16 << 20)))

    return pl.pallas_call(
        _outer_kernel,
        out_shape=jax.ShapeDtypeStruct((sk, sv), jnp.float32),   # unpadded
        grid_spec=grid_spec,
        compiler_params=pltpu.CompilerParams(
            dimension_semantics=("parallel", "parallel"),
            vmem_limit_bytes=vmem_limit,
        ),
    )(params, k_col, v_row)


def reference(q1, k1, v1, wq, bq, wk, bk, wv, bv):
    qp = q1[0, 0, 0] * wq + bq
    kp = k1[0, :, 0] * wk + bk
    vp = v1[0, :, 0] * wv + bv
    qs = qp * kp / math.sqrt(KEY_FEATURE_SIZE)
    return qs[:, None] * vp[None, :]


if __name__ == "__main__":
    root = jax.random.PRNGKey(0)
    ks = jax.random.split(root, 9)

    # Deliberately NOT multiples of (8, 128): exercises clipped edge blocks.
    Sk, Sv = 250, 500
    q1 = jax.random.normal(ks[0], (1, 1, 1), jnp.float32)
    k1 = jax.random.normal(ks[1], (1, Sk, 1), jnp.float32)
    v1 = jax.random.normal(ks[2], (1, Sv, 1), jnp.float32)

    # Deterministic Linear(1, 1) params (PyTorch init bound = 1/sqrt(1) = 1).
    wq = jax.random.uniform(ks[3], (), jnp.float32, -1.0, 1.0)
    bq = jax.random.uniform(ks[4], (), jnp.float32, -1.0, 1.0)
    wk = jax.random.uniform(ks[5], (), jnp.float32, -1.0, 1.0)
    bk = jax.random.uniform(ks[6], (), jnp.float32, -1.0, 1.0)
    wv = jax.random.uniform(ks[7], (), jnp.float32, -1.0, 1.0)
    bv = jax.random.uniform(ks[8], (), jnp.float32, -1.0, 1.0)

    ref = reference(q1, k1, v1, wq, bq, wk, bk, wv, bv)

    # Small explicit tiles: (2 x 2) grid with partial edge blocks on both axes.
    out_small = jax.block_until_ready(
        model_forward(q1, k1, v1, wq, bq, wk, bk, wv, bv, tm=128, tn=256))
    assert out_small.shape == (Sk, Sv)
    assert jnp.allclose(out_small, ref, atol=1e-5, rtol=1e-5)

    # Default tiles (capped to the problem size).
    out_def = jax.block_until_ready(
        model_forward(q1, k1, v1, wq, bq, wk, bk, wv, bv))
    assert out_def.shape == (Sk, Sv)
    assert jnp.allclose(out_def, ref, atol=1e-5, rtol=1e-5)

    print("KERNEL_OK")
</pallas_src>

<mosaic_0001>
module attributes {stable_mosaic.version = 11 : i64} {
  func.func @_outer_kernel(%arg0: i32, %arg1: i32, %arg2: memref<4xf32, #tpu.memory_space<smem>>, %arg3: memref<128x1xf32, #tpu.memory_space<vmem>>, %arg4: memref<1x256xf32, #tpu.memory_space<vmem>>, %arg5: memref<128x256xf32, #tpu.memory_space<vmem>>) attributes {dimension_semantics = [#tpu.dimension_semantics<parallel>, #tpu.dimension_semantics<parallel>], iteration_bounds = array<i64: 2, 2>, scalar_prefetch = 1 : i64, scratch_operands = 0 : i64, tpu.core_type = #tpu.core_type<tc>, window_params = [{transform_indices = @transform_0, window_bounds = array<i64: 128, 1>}, {transform_indices = @transform_1, window_bounds = array<i64: 1, 256>}, {transform_indices = @transform_2, window_bounds = array<i64: 128, 256>}]} {
    %c0 = arith.constant 0 : index
    %c0_0 = arith.constant 0 : index
    %0 = vector.load %arg3[%c0, %c0_0] : memref<128x1xf32, #tpu.memory_space<vmem>>, vector<128x1xf32>
    %c0_1 = arith.constant 0 : index
    %1 = memref.load %arg2[%c0_1] : memref<4xf32, #tpu.memory_space<smem>>
    %2 = vector.broadcast %1 : f32 to vector<128x1xf32>
    %3 = arith.mulf %0, %2 : vector<128x1xf32>
    %c1 = arith.constant 1 : index
    %4 = memref.load %arg2[%c1] : memref<4xf32, #tpu.memory_space<smem>>
    %5 = vector.broadcast %4 : f32 to vector<128x1xf32>
    %6 = arith.addf %3, %5 : vector<128x1xf32>
    %c0_2 = arith.constant 0 : index
    %c0_3 = arith.constant 0 : index
    %7 = vector.load %arg4[%c0_2, %c0_3] : memref<1x256xf32, #tpu.memory_space<vmem>>, vector<1x256xf32>
    %c2 = arith.constant 2 : index
    %8 = memref.load %arg2[%c2] : memref<4xf32, #tpu.memory_space<smem>>
    %9 = vector.broadcast %8 : f32 to vector<1x256xf32>
    %10 = arith.mulf %7, %9 : vector<1x256xf32>
    %c3 = arith.constant 3 : index
    %11 = memref.load %arg2[%c3] : memref<4xf32, #tpu.memory_space<smem>>
    %12 = vector.broadcast %11 : f32 to vector<1x256xf32>
    %13 = arith.addf %10, %12 : vector<1x256xf32>
    %14 = vector.broadcast %6 : vector<128x1xf32> to vector<128x256xf32>
    %15 = vector.broadcast %13 : vector<1x256xf32> to vector<128x256xf32>
    %16 = arith.mulf %14, %15 : vector<128x256xf32>
    %c0_4 = arith.constant 0 : index
    %c0_5 = arith.constant 0 : index
    %17 = vector.load %arg5[%c0_4, %c0_5] : memref<128x256xf32, #tpu.memory_space<vmem>>, vector<128x256xf32>
    tpu.vector_store %arg5[%c0_4, %c0_5], %16 {strides = array<i32>} : memref<128x256xf32, #tpu.memory_space<vmem>>, vector<128x256xf32>,
    return
  }
  func.func @transform_0(%arg0: i32, %arg1: i32, %arg2: memref<4xf32, #tpu.memory_space<smem>>) -> (i32, i32) {
    %c0_i32 = arith.constant 0 : i32
    %c0_i32_0 = arith.constant 0 : i32
    return %arg0, %c0_i32 : i32, i32
  }
  func.func @transform_1(%arg0: i32, %arg1: i32, %arg2: memref<4xf32, #tpu.memory_space<smem>>) -> (i32, i32) {
    %c0_i32 = arith.constant 0 : i32
    %c0_i32_0 = arith.constant 0 : i32
    return %c0_i32, %arg1 : i32, i32
  }
  func.func @transform_2(%arg0: i32, %arg1: i32, %arg2: memref<4xf32, #tpu.memory_space<smem>>) -> (i32, i32) {
    %c0_i32 = arith.constant 0 : i32
    return %arg0, %arg1 : i32, i32
  }
}

</mosaic_0001>

<llo_original>
// kernel: tpu_custom_call.1
$region0: #{tpu_custom_call.1}
  #allocation0 [shape = 'u32[]', space=smem, size = 0x4, offset = 0x4, fixed_abs, tag = 'smem constant byte address 0x4 - core index']
  #allocation1 [shape = 'u32[144,128]{1,0:T(1,128)}', space=vmem, size = 0x12000, scoped, tag = 'internal scratch']
  #allocation2 [shape = 's32[1]{0}', space=sflag, size = 0x4, scoped, tag = 'scoped memory for tpu_custom_call.1']
  #allocation3 [shape = 'u8[512]{0}', space=smem, size = 0x200, scoped, tag = 'prefetched SMEM operand 0']
  %s0 = inlined_call_operand.vmem [shape: f32[4], index: 0, kind: input, shape index: {}]
  %s1 = inlined_call_operand.vmem [shape: f32[250,1], index: 1, kind: input, shape index: {}]
  %s2 = inlined_call_operand.vmem [shape: f32[1,500], index: 2, kind: input, shape index: {}]
  %s3 = inlined_call_operand.vmem [shape: f32[250,500], index: 3, kind: output, shape index: {}]
  %s4 = sld [smem:[#allocation0]]
  $region60: #{tpu_custom_call.1} parent=0
    _
  %s6 = ssub.s32 1, %s4
  %s7 = scalar_select 0, %s6, %s4
  %s8 = sshll.u32 %s0, 4
  %s9 = int_to_ptr.vmem [resolvable:$true] %s8
  %11 = dma.vmem_to_smem %s9, 16, [#allocation3], [#allocation2]
  %12 = dma.done [#allocation2], 16
  %13 = sfence
  $region1: #{tpu_custom_call.1} parent=0
    #allocation4 [shape = 'u8[262144]{0}', space=vmem, size = 0x40000, scoped, tag = 'output window, operand 0']
    loop: start=0, step=1, limit=6
    $region2: #{tpu_custom_call.1} parent=1 // loop_pre_header
      _
    $region3: #{tpu_custom_call.1} parent=1 // loop_header
      %s15 = sphi 0, %s19
      %p16 = scmp.ge.s32.totalorder %s15, 6
      %s22 = sphi 0, %s34
      %s23 = sphi 0, %s30
      %s24 = sphi 0, %s22
      %s25 = sphi 0, %s23
      %s26 = sphi 0, %s24
      %s27 = sphi 0, %s25
      %s37 = sphi 0, %s39
      %s40 = sphi 0, %s37
      %s41 = sphi 0, %s40
      %s57 = sphi 0, %s41
      %s63 = sphi 0, %s65
      %s66 = sphi 0, %s63
      %s67 = sphi 0, %s66
      %s83 = sphi 0, %s67
      %s91 = sphi 0, %s93
      %s94 = sphi 0, %s91
      %s95 = sphi 0, %s94
      %s111 = sphi 0, %s95
    $region4: #{tpu_custom_call.1} parent=1 // loop_header_branch
      %18 = sbr.rel (%p16) target = $region8
    $region5: #{tpu_custom_call.1} parent=1 // loop_body
      %s20 = ssub.s32 %s15, 1
      %s21 = ssub.s32 %s15, 2
      %s28 = sadd.s32 1, %s23
      %p29 = scmp.ge.s32.totalorder %s28, 2
      %s30 = scalar_select %p29, 0, %s28
      %s31 = sadd.s32 1, %s22
      %s32 = scalar_select %p29, %s31, %s22
      %p33 = scmp.ge.s32.totalorder %s32, 2
      %s34 = scalar_select %p33, 0, %s32
      %s35 = ssub.s32 %s22, %s34
      %p36 = scmp.eq.s32.totalorder %s35, 0
      %s38 = sadd.s32 %s37, 1
      %s39 = scalar_select %p36, %s37, %s38
      %p42 = pneg %p36
      %p43 = scmp.eq.s32.totalorder %s15, 3
      %p44 = por %p42, %p43
      %p45 = scmp.ne.s32.totalorder %s37, %s40
      %p46 = scmp.eq.s32.totalorder %s15, 0
      %p47 = por %p45, %p46
      %p48 = scmp.ne.s32.totalorder %s37, %s40
      %p49 = scmp.eq.s32.totalorder %s20, 3
      %p50 = por %p48, %p49
      %p51 = scmp.ne.s32.totalorder %s40, %s41
      %p52 = scmp.eq.s32.totalorder %s20, 0
      %p53 = por %p51, %p52
      %p54 = scmp.ne.s32.totalorder %s40, %s41
      %p55 = scmp.eq.s32.totalorder %s21, 3
      %p56 = por %p54, %p55
      %p58 = scmp.ne.s32.totalorder %s41, %s57
      %p59 = scmp.eq.s32.totalorder %s21, 0
      %p60 = por %p58, %p59
      %s61 = ssub.s32 %s23, %s30
      %p62 = scmp.eq.s32.totalorder %s61, 0
      %s64 = sadd.s32 %s63, 1
      %s65 = scalar_select %p62, %s63, %s64
      %p68 = pneg %p62
      %p69 = scmp.eq.s32.totalorder %s15, 3
      %p70 = por %p68, %p69
      %p71 = scmp.ne.s32.totalorder %s63, %s66
      %p72 = scmp.eq.s32.totalorder %s15, 0
      %p73 = por %p71, %p72
      %p74 = scmp.ne.s32.totalorder %s63, %s66
      %p75 = scmp.eq.s32.totalorder %s20, 3
      %p76 = por %p74, %p75
      %p77 = scmp.ne.s32.totalorder %s66, %s67
      %p78 = scmp.eq.s32.totalorder %s20, 0
      %p79 = por %p77, %p78
      %p80 = scmp.ne.s32.totalorder %s66, %s67
      %p81 = scmp.eq.s32.totalorder %s21, 3
      %p82 = por %p80, %p81
      %p84 = scmp.ne.s32.totalorder %s67, %s83
      %p85 = scmp.eq.s32.totalorder %s21, 0
      %p86 = por %p84, %p85
      %s87 = ssub.s32 %s22, %s34
      %s88 = ssub.s32 %s23, %s30
      %s89 = sor.u32 %s87, %s88
      %p90 = scmp.eq.s32.totalorder %s89, 0
      %s92 = sadd.s32 %s91, 1
      %s93 = scalar_select %p90, %s91, %s92
      %p96 = pneg %p90
      %p97 = scmp.eq.s32.totalorder %s15, 3
      %p98 = por %p96, %p97
      %p99 = scmp.ne.s32.totalorder %s91, %s94
      %p100 = scmp.eq.s32.totalorder %s15, 0
      %p101 = por %p99, %p100
      %p102 = scmp.ne.s32.totalorder %s91, %s94
      %p103 = scmp.eq.s32.totalorder %s20, 3
      %p104 = por %p102, %p103
      %p105 = scmp.ne.s32.totalorder %s94, %s95
      %p106 = scmp.eq.s32.totalorder %s20, 0
      %p107 = por %p105, %p106
      %p108 = scmp.ne.s32.totalorder %s94, %s95
      %p109 = scmp.eq.s32.totalorder %s21, 3
      %p110 = por %p108, %p109
      %p112 = scmp.ne.s32.totalorder %s95, %s111
      %p113 = scmp.eq.s32.totalorder %s21, 0
      %p114 = por %p112, %p113
      %p115 = scmp.le.s32.totalorder 1, %s15
      %p116 = scmp.lt.s32.totalorder %s15, 5
      %p117 = pnand %p115, %p116
      %p118 = pneg %p117
      // Predicated region
      $region9: #{tpu_custom_call.1} parent=5 // pred_check
        _
      $region10: #{tpu_custom_call.1} parent=5 // pred_check_branch
        %120 = sbr.rel (%p117) target = $region12
      $region11: #{tpu_custom_call.1} parent=5 // pred_region
        %s121 = ssub.s32 %s15, 1
      $region12: #{tpu_custom_call.1} parent=5 // pred_fallthru
        _
      %p122 = scmp.lt.s32.totalorder %s15, 4
      // Predicated region
      $region13: #{tpu_custom_call.1} parent=5 // pred_check
        %p123 = pneg %p122
      $region14: #{tpu_custom_call.1} parent=5 // pred_check_branch
        %125 = sbr.rel (%p123) target = $region16
      $region15: #{tpu_custom_call.1} parent=5 // pred_region
        // Predicated region
        $region17: #{tpu_custom_call.1} parent=15 // pred_check
          %p126 = pneg %p47
        $region18: #{tpu_custom_call.1} parent=15 // pred_check_branch
          %128 = sbr.rel (%p126) target = $region20
        $region19: #{tpu_custom_call.1} parent=15 // pred_region
          %s129 = smul.u32 16, %s22
          %p130 = scmp.lt.s32.totalorder %s129, 31
          %s131 = scalar_select %p130, %s129, 31
          %s132 = smul.addr %s131, 8
          %s133 = scalar_lea.vmem %s1, %s132
          %s134 = smul.u32 16, %s22
        $region20: #{tpu_custom_call.1} parent=15 // pred_fallthru
          _
        // Predicated region
        $region21: #{tpu_custom_call.1} parent=15 // pred_check
          %p135 = pneg %p73
        $region22: #{tpu_custom_call.1} parent=15 // pred_check_branch
          %137 = sbr.rel (%p135) target = $region24
        $region23: #{tpu_custom_call.1} parent=15 // pred_region
          %s138 = smul.u32 2, %s23
          %p139 = scmp.lt.s32.totalorder %s138, 3
          %s140 = scalar_select %p139, %s138, 3
          %s141 = scalar_lea.vmem %s2, %s140
          %s142 = smul.u32 2, %s23
        $region24: #{tpu_custom_call.1} parent=15 // pred_fallthru
          _
      $region16: #{tpu_custom_call.1} parent=5 // pred_fallthru
        _
      %p143 = scmp.le.s32.totalorder 1, %s15
      %p144 = scmp.lt.s32.totalorder %s15, 5
      %p145 = pnand %p143, %p144
      %p146 = pneg %p145
      // Predicated region
      $region25: #{tpu_custom_call.1} parent=5 // pred_check
        _
      $region26: #{tpu_custom_call.1} parent=5 // pred_check_branch
        %148 = sbr.rel (%p145) target = $region28
      $region27: #{tpu_custom_call.1} parent=5 // pred_region
        %s149 = ssub.s32 %s15, 1
        %s150 = smul.u32 16, %s24
        %p151 = scmp.lt.s32.totalorder %s150, 31
        %s152 = scalar_select %p151, %s150, 31
        %s153 = smul.addr %s152, 8
        %s154 = scalar_lea.vmem %s1, %s153
        %p155 = pneg %p53
        %p156 = pneg %p50
        %s157 = smul.u32 2, %s25
        %p158 = scmp.lt.s32.totalorder %s157, 3
        %s159 = scalar_select %p158, %s157, 3
        %s160 = scalar_lea.vmem %s2, %s159
        %p161 = pneg %p79
        %p162 = pneg %p76
        %p163 = pneg %p107
        %p164 = pneg %p104
        %s165 = sand.u32 %s94, 1
        %s166 = sand.u32 %s94, 1
        %s167 = smul.addr %s166, 256
        %s168 = scalar_lea.vmem [#allocation4], %s167
        %s169 = smul.u32 16, %s24
        %p170 = scmp.lt.s32.totalorder %s169, 31
        %s171 = scalar_select %p170, %s169, 31
        %s172 = smul.addr %s171, 8
        %s173 = scalar_lea.vmem %s1, %s172
        %s174 = smul.u32 16, %s24
        %s175 = smul.u32 2, %s25
        %p176 = scmp.lt.s32.totalorder %s175, 3
        %s177 = scalar_select %p176, %s175, 3
        %s178 = scalar_lea.vmem %s2, %s177
        %s179 = smul.u32 2, %s25
        %s180 = smul.u32 16, %s24
        %s181 = smul.u32 2, %s25
        %v182 = vld [vmem:[%s173] sm:$0xff]
        %v183 = vld [vmem:[%s173 + $0x8] sm:$0xff]
        %v184 = vld [vmem:[%s173 + $0x10] sm:$0xff]
        %v185 = vld [vmem:[%s173 + $0x18] sm:$0xff]
        %v186 = vld [vmem:[%s173 + $0x20] sm:$0xff]
        %v187 = vld [vmem:[%s173 + $0x28] sm:$0xff]
        %v188 = vld [vmem:[%s173 + $0x30] sm:$0xff]
        %v189 = vld [vmem:[%s173 + $0x38] sm:$0xff]
        %v190 = vld [vmem:[%s173 + $0x40] sm:$0xff]
        %v191 = vld [vmem:[%s173 + $0x48] sm:$0xff]
        %v192 = vld [vmem:[%s173 + $0x50] sm:$0xff]
        %v193 = vld [vmem:[%s173 + $0x58] sm:$0xff]
        %v194 = vld [vmem:[%s173 + $0x60] sm:$0xff]
        %v195 = vld [vmem:[%s173 + $0x68] sm:$0xff]
        %v196 = vld [vmem:[%s173 + $0x70] sm:$0xff]
        %v197 = vld [vmem:[%s173 + $0x78] sm:$0xff]
        %s198 = sld [smem:[#allocation3]]
        %v199 = vstv %s198
        %v200 = vmul.f32 %v182, %v199
        %v201 = vmul.f32 %v183, %v199
        %v202 = vmul.f32 %v184, %v199
        %v203 = vmul.f32 %v185, %v199
        %v204 = vmul.f32 %v186, %v199
        %v205 = vmul.f32 %v187, %v199
        %v206 = vmul.f32 %v188, %v199
        %v207 = vmul.f32 %v189, %v199
        %v208 = vmul.f32 %v190, %v199
        %v209 = vmul.f32 %v191, %v199
        %v210 = vmul.f32 %v192, %v199
        %v211 = vmul.f32 %v193, %v199
        %v212 = vmul.f32 %v194, %v199
        %v213 = vmul.f32 %v195, %v199
        %v214 = vmul.f32 %v196, %v199
        %v215 = vmul.f32 %v197, %v199
        %s216 = sld [smem:[#allocation3 + $0x1]]
        %v217 = vstv %s216
        %v218 = vadd.f32 %v200, %v217
        %v219 = vadd.f32 %v201, %v217
        %v220 = vadd.f32 %v202, %v217
        %v221 = vadd.f32 %v203, %v217
        %v222 = vadd.f32 %v204, %v217
        %v223 = vadd.f32 %v205, %v217
        %v224 = vadd.f32 %v206, %v217
        %v225 = vadd.f32 %v207, %v217
        %v226 = vadd.f32 %v208, %v217
        %v227 = vadd.f32 %v209, %v217
        %v228 = vadd.f32 %v210, %v217
        %v229 = vadd.f32 %v211, %v217
        %v230 = vadd.f32 %v212, %v217
        %v231 = vadd.f32 %v213, %v217
        %v232 = vadd.f32 %v214, %v217
        %v233 = vadd.f32 %v215, %v217
        %v234 = vld [vmem:[%s178] sm:$0x3]
        %s235 = sld [smem:[#allocation3 + $0x2]]
        %v236 = vstv %s235
        %v237 = vmul.f32 %v234, %v236
        %s238 = sld [smem:[#allocation3 + $0x3]]
        %v239 = vstv %s238
        %v240 = vadd.f32 %v237, %v239
        %242 = vset.pattern.permute.xlu0 0
        %243 = vperm.xlu0 %242, %v218
        %v244 = vpop.permute.xlu0 %243
        %247 = vset.pattern.permute.xlu0 0
        %248 = vperm.xlu0 %247, %v219
        %v249 = vpop.permute.xlu0 %248
        %252 = vset.pattern.permute.xlu0 0
        %253 = vperm.xlu0 %252, %v220
        %v254 = vpop.permute.xlu0 %253
        %257 = vset.pattern.permute.xlu0 0
        %258 = vperm.xlu0 %257, %v221
        %v259 = vpop.permute.xlu0 %258
        %262 = vset.pattern.permute.xlu0 0
        %263 = vperm.xlu0 %262, %v222
        %v264 = vpop.permute.xlu0 %263
        %267 = vset.pattern.permute.xlu0 0
        %268 = vperm.xlu0 %267, %v223
        %v269 = vpop.permute.xlu0 %268
        %272 = vset.pattern.permute.xlu0 0
        %273 = vperm.xlu0 %272, %v224
        %v274 = vpop.permute.xlu0 %273
        %277 = vset.pattern.permute.xlu0 0
        %278 = vperm.xlu0 %277, %v225
        %v279 = vpop.permute.xlu0 %278
        %282 = vset.pattern.permute.xlu0 0
        %283 = vperm.xlu0 %282, %v226
        %v284 = vpop.permute.xlu0 %283
        %287 = vset.pattern.permute.xlu0 0
        %288 = vperm.xlu0 %287, %v227
        %v289 = vpop.permute.xlu0 %288
        %292 = vset.pattern.permute.xlu0 0
        %293 = vperm.xlu0 %292, %v228
        %v294 = vpop.permute.xlu0 %293
        %297 = vset.pattern.permute.xlu0 0
        %298 = vperm.xlu0 %297, %v229
        %v299 = vpop.permute.xlu0 %298
        %302 = vset.pattern.permute.xlu0 0
        %303 = vperm.xlu0 %302, %v230
        %v304 = vpop.permute.xlu0 %303
        %307 = vset.pattern.permute.xlu0 0
        %308 = vperm.xlu0 %307, %v231
        %v309 = vpop.permute.xlu0 %308
        %312 = vset.pattern.permute.xlu0 0
        %313 = vperm.xlu0 %312, %v232
        %v314 = vpop.permute.xlu0 %313
        %317 = vset.pattern.permute.xlu0 0
        %318 = vperm.xlu0 %317, %v233
        %v319 = vpop.permute.xlu0 %318
        %v322 = vlaneseq
        %v323 = vshrl.u32 %v322, 7
        %v324 = vsub.s32 0, %v323
        %v325 = vrot.slane %v240, %v324
        %v326 = vlaneseq
        %v327 = vshrl.u32 %v326, 7
        %v328 = vsub.s32 1, %v327
        %v329 = vrot.slane %v240, %v328
        %v332 = vmul.f32 %v244, %v325
        %v333 = vmul.f32 %v244, %v329
        %v334 = vmul.f32 %v249, %v325
        %v335 = vmul.f32 %v249, %v329
        %v336 = vmul.f32 %v254, %v325
        %v337 = vmul.f32 %v254, %v329
        %v338 = vmul.f32 %v259, %v325
        %v339 = vmul.f32 %v259, %v329
        %v340 = vmul.f32 %v264, %v325
        %v341 = vmul.f32 %v264, %v329
        %v342 = vmul.f32 %v269, %v325
        %v343 = vmul.f32 %v269, %v329
        %v344 = vmul.f32 %v274, %v325
        %v345 = vmul.f32 %v274, %v329
        %v346 = vmul.f32 %v279, %v325
        %v347 = vmul.f32 %v279, %v329
        %v348 = vmul.f32 %v284, %v325
        %v349 = vmul.f32 %v284, %v329
        %v350 = vmul.f32 %v289, %v325
        %v351 = vmul.f32 %v289, %v329
        %v352 = vmul.f32 %v294, %v325
        %v353 = vmul.f32 %v294, %v329
        %v354 = vmul.f32 %v299, %v325
        %v355 = vmul.f32 %v299, %v329
        %v356 = vmul.f32 %v304, %v325
        %v357 = vmul.f32 %v304, %v329
        %v358 = vmul.f32 %v309, %v325
        %v359 = vmul.f32 %v309, %v329
        %v360 = vmul.f32 %v314, %v325
        %v361 = vmul.f32 %v314, %v329
        %v362 = vmul.f32 %v319, %v325
        %v363 = vmul.f32 %v319, %v329
        %364 = vst [vmem:[%s168] sm:$0xff] %v332
        %365 = vst [vmem:[%s168 + $0x8] sm:$0xff] %v333
        %366 = vst [vmem:[%s168 + $0x10] sm:$0xff] %v334
        %367 = vst [vmem:[%s168 + $0x18] sm:$0xff] %v335
        %368 = vst [vmem:[%s168 + $0x20] sm:$0xff] %v336
        %369 = vst [vmem:[%s168 + $0x28] sm:$0xff] %v337
        %370 = vst [vmem:[%s168 + $0x30] sm:$0xff] %v338
        %371 = vst [vmem:[%s168 + $0x38] sm:$0xff] %v339
        %372 = vst [vmem:[%s168 + $0x40] sm:$0xff] %v340
        %373 = vst [vmem:[%s168 + $0x48] sm:$0xff] %v341
        %374 = vst [vmem:[%s168 + $0x50] sm:$0xff] %v342
        %375 = vst [vmem:[%s168 + $0x58] sm:$0xff] %v343
        %376 = vst [vmem:[%s168 + $0x60] sm:$0xff] %v344
        %377 = vst [vmem:[%s168 + $0x68] sm:$0xff] %v345
        %378 = vst [vmem:[%s168 + $0x70] sm:$0xff] %v346
        %379 = vst [vmem:[%s168 + $0x78] sm:$0xff] %v347
        %380 = vst [vmem:[%s168 + $0x80] sm:$0xff] %v348
        %381 = vst [vmem:[%s168 + $0x88] sm:$0xff] %v349
        %382 = vst [vmem:[%s168 + $0x90] sm:$0xff] %v350
        %383 = vst [vmem:[%s168 + $0x98] sm:$0xff] %v351
        %384 = vst [vmem:[%s168 + $0xa0] sm:$0xff] %v352
        %385 = vst [vmem:[%s168 + $0xa8] sm:$0xff] %v353
        %386 = vst [vmem:[%s168 + $0xb0] sm:$0xff] %v354
        %387 = vst [vmem:[%s168 + $0xb8] sm:$0xff] %v355
        %388 = vst [vmem:[%s168 + $0xc0] sm:$0xff] %v356
        %389 = vst [vmem:[%s168 + $0xc8] sm:$0xff] %v357
        %390 = vst [vmem:[%s168 + $0xd0] sm:$0xff] %v358
        %391 = vst [vmem:[%s168 + $0xd8] sm:$0xff] %v359
        %392 = vst [vmem:[%s168 + $0xe0] sm:$0xff] %v360
        %393 = vst [vmem:[%s168 + $0xe8] sm:$0xff] %v361
        %394 = vst [vmem:[%s168 + $0xf0] sm:$0xff] %v362
        %395 = vst [vmem:[%s168 + $0xf8] sm:$0xff] %v363
        %s396 = sand.u32 %s94, 1
        %s397 = sand.u32 %s94, 1
        %s398 = smul.addr %s397, 256
        %s399 = scalar_lea.vmem [#allocation4], %s398
        // Predicated region
        $region29: #{tpu_custom_call.1} parent=27 // pred_check
          %p400 = pneg %p104
        $region30: #{tpu_custom_call.1} parent=27 // pred_check_branch
          %402 = sbr.rel (%p400) target = $region32
        $region31: #{tpu_custom_call.1} parent=27 // pred_region
          %s403 = smul.u32 16, %s24
          %s404 = smul.u32 2, %s25
          %s405 = smul.addr %s403, 4
          %s406 = sadd.s32 %s404, %s405
          %s407 = smul.addr %s406, 8
          %s408 = scalar_lea.vmem %s3, %s407
          // Predicated region
          $region33: #{tpu_custom_call.1} parent=31 // pred_check
            _
          $region34: #{tpu_custom_call.1} parent=31 // pred_check_branch
            %410 = sbr.rel (0) target = $region36
          $region35: #{tpu_custom_call.1} parent=31 // pred_region
            // Predicated region
            $region37: #{tpu_custom_call.1} parent=35 // pred_check
              _
            $region38: #{tpu_custom_call.1} parent=35 // pred_check_branch
              %412 = sbr.rel (0) target = $region40
            $region39: #{tpu_custom_call.1} parent=35 // pred_region
              loop: start=0, step=1, limit=1
              $region41: #{tpu_custom_call.1} parent=39 // loop_pre_header
                _
              $region42: #{tpu_custom_call.1} parent=39 // loop_header
                %s414 = sphi 0, %s418
                %p415 = scmp.ge.s32.totalorder %s414, 1
                %s419 = sphi %s399, %s399
                %s420 = sphi %s408, %s408
              $region43: #{tpu_custom_call.1} parent=39 // loop_header_branch
                %417 = sbr.rel (%p415) target = $region47
              $region44: #{tpu_custom_call.1} parent=39 // loop_body
                %v421 = vld [vmem:[%s419] sm:$0xff]
                %422 = vst [vmem:[%s420] sm:$0xff] %v421
                %v423 = vld [vmem:[%s419 + $0x8] sm:$0xff]
                %424 = vst [vmem:[%s420 + $0x8] sm:$0xff] %v423
                %v425 = vld [vmem:[%s419 + $0x10] sm:$0xff]
                %426 = vst [vmem:[%s420 + $0x20] sm:$0xff] %v425
                %v427 = vld [vmem:[%s419 + $0x18] sm:$0xff]
                %428 = vst [vmem:[%s420 + $0x28] sm:$0xff] %v427
                %v429 = vld [vmem:[%s419 + $0x20] sm:$0xff]
                %430 = vst [vmem:[%s420 + $0x40] sm:$0xff] %v429
                %v431 = vld [vmem:[%s419 + $0x28] sm:$0xff]
                %432 = vst [vmem:[%s420 + $0x48] sm:$0xff] %v431
                %v433 = vld [vmem:[%s419 + $0x30] sm:$0xff]
                %434 = vst [vmem:[%s420 + $0x60] sm:$0xff] %v433
                %v435 = vld [vmem:[%s419 + $0x38] sm:$0xff]
                %436 = vst [vmem:[%s420 + $0x68] sm:$0xff] %v435
                %v437 = vld [vmem:[%s419 + $0x40] sm:$0xff]
                %438 = vst [vmem:[%s420 + $0x80] sm:$0xff] %v437
                %v439 = vld [vmem:[%s419 + $0x48] sm:$0xff]
                %440 = vst [vmem:[%s420 + $0x88] sm:$0xff] %v439
                %v441 = vld [vmem:[%s419 + $0x50] sm:$0xff]
                %442 = vst [vmem:[%s420 + $0xa0] sm:$0xff] %v441
                %v443 = vld [vmem:[%s419 + $0x58] sm:$0xff]
                %444 = vst [vmem:[%s420 + $0xa8] sm:$0xff] %v443
                %v445 = vld [vmem:[%s419 + $0x60] sm:$0xff]
                %446 = vst [vmem:[%s420 + $0xc0] sm:$0xff] %v445
                %v447 = vld [vmem:[%s419 + $0x68] sm:$0xff]
                %448 = vst [vmem:[%s420 + $0xc8] sm:$0xff] %v447
                %v449 = vld [vmem:[%s419 + $0x70] sm:$0xff]
                %450 = vst [vmem:[%s420 + $0xe0] sm:$0xff] %v449
                %v451 = vld [vmem:[%s419 + $0x78] sm:$0xff]
                %452 = vst [vmem:[%s420 + $0xe8] sm:$0xff] %v451
                %v453 = vld [vmem:[%s419 + $0x80] sm:$0xff]
                %454 = vst [vmem:[%s420 + $0x100] sm:$0xff] %v453
                %v455 = vld [vmem:[%s419 + $0x88] sm:$0xff]
                %456 = vst [vmem:[%s420 + $0x108] sm:$0xff] %v455
                %v457 = vld [vmem:[%s419 + $0x90] sm:$0xff]
                %458 = vst [vmem:[%s420 + $0x120] sm:$0xff] %v457
                %v459 = vld [vmem:[%s419 + $0x98] sm:$0xff]
                %460 = vst [vmem:[%s420 + $0x128] sm:$0xff] %v459
                %v461 = vld [vmem:[%s419 + $0xa0] sm:$0xff]
                %462 = vst [vmem:[%s420 + $0x140] sm:$0xff] %v461
                %v463 = vld [vmem:[%s419 + $0xa8] sm:$0xff]
                %464 = vst [vmem:[%s420 + $0x148] sm:$0xff] %v463
                %v465 = vld [vmem:[%s419 + $0xb0] sm:$0xff]
                %466 = vst [vmem:[%s420 + $0x160] sm:$0xff] %v465
                %v467 = vld [vmem:[%s419 + $0xb8] sm:$0xff]
                %468 = vst [vmem:[%s420 + $0x168] sm:$0xff] %v467
                %v469 = vld [vmem:[%s419 + $0xc0] sm:$0xff]
                %470 = vst [vmem:[%s420 + $0x180] sm:$0xff] %v469
                %v471 = vld [vmem:[%s419 + $0xc8] sm:$0xff]
                %472 = vst [vmem:[%s420 + $0x188] sm:$0xff] %v471
                %v473 = vld [vmem:[%s419 + $0xd0] sm:$0xff]
                %474 = vst [vmem:[%s420 + $0x1a0] sm:$0xff] %v473
                %v475 = vld [vmem:[%s419 + $0xd8] sm:$0xff]
                %476 = vst [vmem:[%s420 + $0x1a8] sm:$0xff] %v475
                %v477 = vld [vmem:[%s419 + $0xe0] sm:$0xff]
                %478 = vst [vmem:[%s420 + $0x1c0] sm:$0xff] %v477
                %v479 = vld [vmem:[%s419 + $0xe8] sm:$0xff]
                %480 = vst [vmem:[%s420 + $0x1c8] sm:$0xff] %v479
                %v481 = vld [vmem:[%s419 + $0xf0] sm:$0xff]
                %482 = vst [vmem:[%s420 + $0x1e0] sm:$0xff] %v481
                %v483 = vld [vmem:[%s419 + $0xf8] sm:$0xff]
                %484 = vst [vmem:[%s420 + $0x1e8] sm:$0xff] %v483
              $region45: #{tpu_custom_call.1} parent=39 // loop_footer
                %s418 = sadd.s32 1, %s414
              $region46: #{tpu_custom_call.1} parent=39 // loop_footer_branch
                %413 = sbr.rel target = $region42
              $region47: #{tpu_custom_call.1} parent=39 // loop_exit
                _
            $region40: #{tpu_custom_call.1} parent=35 // pred_fallthru
              _
            // Predicated region
            $region48: #{tpu_custom_call.1} parent=35 // pred_check
              _
            $region49: #{tpu_custom_call.1} parent=35 // pred_check_branch
              %486 = sbr.rel target = $region51
            $region50: #{tpu_custom_call.1} parent=35 // pred_region
              _
            $region51: #{tpu_custom_call.1} parent=35 // pred_fallthru
              _
          $region36: #{tpu_custom_call.1} parent=31 // pred_fallthru
            _
          %487 = vnop
        $region32: #{tpu_custom_call.1} parent=27 // pred_fallthru
          _
      $region28: #{tpu_custom_call.1} parent=5 // pred_fallthru
        _
      %p488 = scmp.le.s32.totalorder 2, %s15
      // Predicated region
      $region52: #{tpu_custom_call.1} parent=5 // pred_check
        %p489 = pneg %p488
      $region53: #{tpu_custom_call.1} parent=5 // pred_check_branch
        %491 = sbr.rel (%p489) target = $region55
      $region54: #{tpu_custom_call.1} parent=5 // pred_region
        %s492 = ssub.s32 %s15, 2
        // Predicated region
        $region56: #{tpu_custom_call.1} parent=54 // pred_check
          %p493 = pneg %p110
        $region57: #{tpu_custom_call.1} parent=54 // pred_check_branch
          %495 = sbr.rel (%p493) target = $region59
        $region58: #{tpu_custom_call.1} parent=54 // pred_region
          %s496 = sand.u32 %s95, 1
          %s497 = sand.u32 %s95, 1
          %s498 = smul.addr %s497, 256
          %s499 = scalar_lea.vmem [#allocation4], %s498
        $region59: #{tpu_custom_call.1} parent=54 // pred_fallthru
          _
      $region55: #{tpu_custom_call.1} parent=5 // pred_fallthru
        _
    $region6: #{tpu_custom_call.1} parent=1 // loop_footer
      %s19 = sadd.s32 1, %s15
    $region7: #{tpu_custom_call.1} parent=1 // loop_footer_branch
      %14 = sbr.rel target = $region3
    $region8: #{tpu_custom_call.1} parent=1 // loop_exit
      _

</llo_original>
